<compile_context>
chip_gen: v7x
topology: tpu7x:2x2x1
jax: 0.10.0
libtpu: 0.0.40
codegen_flags: <defaults>
</compile_context>

<pallas_src>
import functools

import jax
import jax.numpy as jnp
from jax.experimental import pallas as pl
from jax.experimental.pallas import tpu as pltpu


# --------------------------------------------------------------------------------------
# Kernels
# --------------------------------------------------------------------------------------

def _adain_rows_kernel(x_ref, style_ref, o_ref, *, eps):
    """Single-pass path. x_ref: (TR, HW), style_ref: (TR, 2) = [gamma, beta], o_ref: (TR, HW)."""
    x = x_ref[...].astype(jnp.float32)

    mean = jnp.mean(x, axis=-1, keepdims=True)              # (TR, 1)
    xc = x - mean
    var = jnp.mean(xc * xc, axis=-1, keepdims=True)          # biased variance (InstanceNorm2d)
    inv_std = jax.lax.rsqrt(var + eps)

    sty = style_ref[...].astype(jnp.float32)                  # (TR, 2)
    gamma = sty[:, 0:1]
    beta = sty[:, 1:2]

    # Reuse the centered copy: out = xc * (gamma * inv_std) + beta
    o_ref[...] = (xc * (gamma * inv_std) + beta).astype(o_ref.dtype)


def _adain_cols_kernel(x_ref, style_ref, o_ref, *, eps):
    """Small-HW transposed path. x_ref: (HW, TC), style_ref: (2, TC), o_ref: (HW, TC)."""
    x = x_ref[...].astype(jnp.float32)

    mean = jnp.mean(x, axis=0, keepdims=True)                 # (1, TC)
    xc = x - mean
    var = jnp.mean(xc * xc, axis=0, keepdims=True)
    inv_std = jax.lax.rsqrt(var + eps)

    sty = style_ref[...].astype(jnp.float32)                   # (2, TC)
    gamma = sty[0:1, :]
    beta = sty[1:2, :]

    o_ref[...] = (xc * (gamma * inv_std) + beta).astype(o_ref.dtype)


def _stats_kernel(x_ref, stats_ref, *, hw_total, thw, eps):
    """Large-HW fallback, pass 1: accumulate f32 sum/sumsq per row across HW tiles.

    Output block stats_ref (TR, 2) is resident across the HW grid axis (accumulator);
    finalized in place to (mean, inv_std) on the last HW step.
    """
    h = pl.program_id(1)

    @pl.when(h == 0)
    def _():
        stats_ref[...] = jnp.zeros_like(stats_ref)

    x = x_ref[...].astype(jnp.float32)
    if hw_total % thw != 0:
        # Mask OOB lanes of the trailing partial HW tile so garbage cannot contaminate sums.
        col = jax.lax.broadcasted_iota(jnp.int32, x.shape, 1) + h * thw
        x = jnp.where(col < hw_total, x, 0.0)

    s = jnp.sum(x, axis=-1, keepdims=True)
    s2 = jnp.sum(x * x, axis=-1, keepdims=True)
    stats_ref[...] += jnp.concatenate([s, s2], axis=-1)

    @pl.when(h == pl.num_programs(1) - 1)
    def _():
        acc = stats_ref[...]
        inv_n = 1.0 / float(hw_total)
        mean = acc[:, 0:1] * inv_n
        var = jnp.maximum(acc[:, 1:2] * inv_n - mean * mean, 0.0)
        stats_ref[...] = jnp.concatenate([mean, jax.lax.rsqrt(var + eps)], axis=-1)


def _apply_kernel(x_ref, stats_ref, style_ref, o_ref):
    """Large-HW fallback, pass 2: out = (x - mean) * (gamma * inv_std) + beta."""
    x = x_ref[...].astype(jnp.float32)
    st = stats_ref[...]                                        # (TR, 2) f32: [mean, inv_std]
    sty = style_ref[...].astype(jnp.float32)                    # (TR, 2): [gamma, beta]
    mean = st[:, 0:1]
    inv_std = st[:, 1:2]
    gamma = sty[:, 0:1]
    beta = sty[:, 1:2]
    o_ref[...] = ((x - mean) * (gamma * inv_std) + beta).astype(o_ref.dtype)


# --------------------------------------------------------------------------------------
# Tiling helpers
# --------------------------------------------------------------------------------------

def _physical_vmem_bytes():
    """Physical per-core VMEM; conservative 64 MiB (v7x) fallback if the query fails."""
    try:
        info = pltpu.get_tpu_info()
        cap = getattr(info, "vmem_capacity_bytes", None)
        if cap:
            return int(cap)
    except Exception:
        pass
    return 64 << 20


def _pick_row_tile(num_rows, per_row_bytes, budget_bytes):
    """Largest multiple-of-8 row tile fitting the budget; keep >=2 (>=4 for big R) grid steps."""
    if num_rows <= 8:
        return num_rows
    max_rows = max(8, int(budget_bytes // per_row_bytes))
    tr = min(num_rows, max_rows)
    tr = max(8, (tr // 8) * 8)
    if num_rows > 16:
        half = max(8, ((num_rows // 2) // 8) * 8)
        tr = min(tr, half)
    if num_rows >= 64:
        quarter = max(8, ((num_rows // 4) // 8) * 8)
        tr = min(tr, quarter)
    return tr


def _pick_col_tile(num_cols, per_col_bytes, budget_bytes):
    """Largest multiple-of-128 column tile fitting the budget (transposed small-HW path)."""
    if num_cols <= 128:
        return num_cols
    max_cols = max(128, int(budget_bytes // per_col_bytes))
    tc = min(num_cols, max_cols)
    tc = max(128, (tc // 128) * 128)
    if num_cols >= 512:
        quarter = max(128, ((num_cols // 4) // 128) * 128)
        tc = min(tc, quarter)
    return tc


def _vmem_limit(phys_bytes, demand_bytes):
    return int(min(phys_bytes, max(32 << 20, demand_bytes + (8 << 20))))


# --------------------------------------------------------------------------------------
# Forward paths
# --------------------------------------------------------------------------------------

def _style_projection(w, style_weight, style_bias, C):
    """EqualizedLinear hoisted to XLA: style = w @ (W * sqrt(2/in_dim)).T + b."""
    w_dim = w.shape[-1]
    scale = (2.0 / w_dim) ** 0.5
    style = (w.astype(jnp.float32)
             @ (style_weight.astype(jnp.float32) * scale).T
             + style_bias.astype(jnp.float32))                 # (B, 2C)
    gamma = style[:, :C].reshape(-1)                            # (B*C,)
    beta = style[:, C:].reshape(-1)                             # (B*C,)
    return gamma, beta


def _forward_lanes_on_spatial(x, gamma, beta, eps, budget, phys, per_row):
    B, C, H, W = x.shape
    R, HW = B * C, H * W
    x_rows = x.reshape(R, HW)
    style_rows = jnp.stack([gamma, beta], axis=-1)              # (R, 2) f32

    TR = _pick_row_tile(R, per_row, budget)
    grid = (pl.cdiv(R, TR),)
    vmem_limit = _vmem_limit(phys, TR * per_row)

    out_rows = pl.pallas_call(
        functools.partial(_adain_rows_kernel, eps=eps),
        out_shape=jax.ShapeDtypeStruct((R, HW), x.dtype),
        grid_spec=pltpu.PrefetchScalarGridSpec(
            num_scalar_prefetch=0,
            grid=grid,
            in_specs=[
                pl.BlockSpec((TR, HW), lambda r: (r, 0)),       # x rows (lane-dense spatial)
                pl.BlockSpec((TR, 2), lambda r: (r, 0)),        # fused [gamma, beta]
            ],
            out_specs=pl.BlockSpec((TR, HW), lambda r: (r, 0)),
        ),
        compiler_params=pltpu.CompilerParams(
            dimension_semantics=("parallel",),
            vmem_limit_bytes=vmem_limit,
        ),
    )(x_rows, style_rows)
    return out_rows.reshape(B, C, H, W)


def _forward_lanes_on_rows(x, gamma, beta, eps, budget, phys, itemsize):
    """HW < 128: keep lanes dense with rows; reduce over the sublane (spatial) axis."""
    B, C, H, W = x.shape
    R, HW = B * C, H * W
    # (B, C, HW) -> (HW, B*C): columns are (b, c) rows, spatial on sublanes.
    x_cols = jnp.transpose(x.reshape(B, C, HW), (2, 0, 1)).reshape(HW, R)
    style_cols = jnp.stack([gamma, beta], axis=0)               # (2, R) f32

    per_col = 4 * HW * itemsize + 2 * HW * 4 + 2 * 8 * 4        # io buffers + f32 temps + style
    TC = _pick_col_tile(R, per_col, budget)
    grid = (pl.cdiv(R, TC),)
    vmem_limit = _vmem_limit(phys, TC * per_col)

    out_cols = pl.pallas_call(
        functools.partial(_adain_cols_kernel, eps=eps),
        out_shape=jax.ShapeDtypeStruct((HW, R), x.dtype),
        grid_spec=pltpu.PrefetchScalarGridSpec(
            num_scalar_prefetch=0,
            grid=grid,
            in_specs=[
                pl.BlockSpec((HW, TC), lambda c: (0, c)),
                pl.BlockSpec((2, TC), lambda c: (0, c)),
            ],
            out_specs=pl.BlockSpec((HW, TC), lambda c: (0, c)),
        ),
        compiler_params=pltpu.CompilerParams(
            dimension_semantics=("parallel",),
            vmem_limit_bytes=vmem_limit,
        ),
    )(x_cols, style_cols)
    return jnp.transpose(out_cols.reshape(HW, B, C), (1, 2, 0)).reshape(B, C, H, W)


def _forward_split_spatial(x, gamma, beta, eps, budget, phys, itemsize):
    """HW too large for a full-row block: two-pass with an HW grid axis (sum/sumsq stats)."""
    B, C, H, W = x.shape
    R, HW = B * C, H * W
    x_rows = x.reshape(R, HW)
    style_rows = jnp.stack([gamma, beta], axis=-1)              # (R, 2) f32

    TR = min(R, 8)
    per_elem = 4 * itemsize + 8                                  # 2 in + 2 out buffers + f32 temps
    THW = min(HW, max(128, (int(budget // max(1, TR * per_elem)) // 128) * 128))
    n_r = pl.cdiv(R, TR)
    n_h = pl.cdiv(HW, THW)
    vmem_limit = _vmem_limit(phys, TR * THW * per_elem + TR * 2 * 4 * 4)

    # Pass 1: per-row (mean, inv_std), accumulated across HW tiles.
    stats = pl.pallas_call(
        functools.partial(_stats_kernel, hw_total=HW, thw=THW, eps=eps),
        out_shape=jax.ShapeDtypeStruct((R, 2), jnp.float32),
        grid_spec=pltpu.PrefetchScalarGridSpec(
            num_scalar_prefetch=0,
            grid=(n_r, n_h),
            in_specs=[pl.BlockSpec((TR, THW), lambda r, h: (r, h))],
            out_specs=pl.BlockSpec((TR, 2), lambda r, h: (r, 0)),
        ),
        compiler_params=pltpu.CompilerParams(
            dimension_semantics=("parallel", "arbitrary"),
            vmem_limit_bytes=vmem_limit,
        ),
    )(x_rows)

    # Pass 2: normalize + style modulation, fully tiled over rows and spatial.
    out_rows = pl.pallas_call(
        _apply_kernel,
        out_shape=jax.ShapeDtypeStruct((R, HW), x.dtype),
        grid_spec=pltpu.PrefetchScalarGridSpec(
            num_scalar_prefetch=0,
            grid=(n_r, n_h),
            in_specs=[
                pl.BlockSpec((TR, THW), lambda r, h: (r, h)),
                pl.BlockSpec((TR, 2), lambda r, h: (r, 0)),     # stats [mean, inv_std]
                pl.BlockSpec((TR, 2), lambda r, h: (r, 0)),     # style [gamma, beta]
            ],
            out_specs=pl.BlockSpec((TR, THW), lambda r, h: (r, h)),
        ),
        compiler_params=pltpu.CompilerParams(
            dimension_semantics=("parallel", "parallel"),
            vmem_limit_bytes=vmem_limit,
        ),
    )(x_rows, stats, style_rows)
    return out_rows.reshape(B, C, H, W)


def adain_forward(x, w, style_weight, style_bias, *, eps=1e-5, vmem_budget_bytes=None):
    """x: (B, C, H, W), w: (B, w_dim), style_weight: (2C, w_dim), style_bias: (2C,)."""
    B, C, H, W = x.shape
    R, HW = B * C, H * W
    gamma, beta = _style_projection(w, style_weight, style_bias, C)

    phys = _physical_vmem_bytes()
    budget = vmem_budget_bytes if vmem_budget_bytes is not None else min(phys // 4, 32 << 20)
    itemsize = jnp.dtype(x.dtype).itemsize

    if HW < 128:
        # Small spatial: lane axis would be <128 wide -> transpose so rows sit on lanes.
        return _forward_lanes_on_rows(x, gamma, beta, eps, budget, phys, itemsize)

    # Per-row VMEM demand: double-buffered in+out blocks, in-kernel f32 working copies
    # (x, xc), and the small fused style block (padded to 128 lanes).
    per_row = 4 * HW * itemsize + 2 * HW * 4 + 2 * 128 * 4
    if min(R, 8) * per_row > budget:
        # Even a minimal full-HW row block overflows: split the spatial axis (two passes).
        return _forward_split_spatial(x, gamma, beta, eps, budget, phys, itemsize)
    return _forward_lanes_on_spatial(x, gamma, beta, eps, budget, phys, per_row)


# --------------------------------------------------------------------------------------
# Reference + self-test
# --------------------------------------------------------------------------------------

def adain_reference(x, w, style_weight, style_bias, eps=1e-5):
    B, C, H, W = x.shape
    scale = (2.0 / w.shape[-1]) ** 0.5
    style = w @ (style_weight * scale).T + style_bias            # (B, 2C)
    gamma = style[:, :C][:, :, None, None]
    beta = style[:, C:][:, :, None, None]
    mean = x.mean(axis=(2, 3), keepdims=True)
    var = ((x - mean) ** 2).mean(axis=(2, 3), keepdims=True)
    xn = (x - mean) / jnp.sqrt(var + eps)
    return gamma * xn + beta


if __name__ == "__main__":
    def make_case(key, B, C, H, W, w_dim, dtype=jnp.float32):
        kx, kw, kwt = jax.random.split(key, 3)
        x = jax.random.normal(kx, (B, C, H, W), dtype=dtype)
        w = jax.random.normal(kw, (B, w_dim), dtype=dtype)
        sw = jax.random.normal(kwt, (2 * C, w_dim), dtype=dtype)  # EqualizedLinear weight ~ N(0,1)
        sb = jnp.zeros((2 * C,), dtype=dtype)                     # bias = zeros
        return x, w, sw, sb

    keys = jax.random.split(jax.random.PRNGKey(0), 4)

    # 1) Canonical shape: single-pass, lanes-on-spatial path.
    x, w, sw, sb = make_case(keys[0], 2, 4, 16, 16, 8)
    out = jax.block_until_ready(adain_forward(x, w, sw, sb))
    ref = adain_reference(x, w, sw, sb)
    assert out.shape == x.shape
    assert jnp.allclose(out, ref, atol=1e-4, rtol=1e-4), "mismatch (main path)"

    # 2) Non-multiple-of-8 B*C: partial trailing row block.
    x, w, sw, sb = make_case(keys[1], 3, 5, 16, 16, 8)
    out = jax.block_until_ready(adain_forward(x, w, sw, sb))
    ref = adain_reference(x, w, sw, sb)
    assert jnp.allclose(out, ref, atol=1e-4, rtol=1e-4), "mismatch (partial row block)"

    # 3) Small spatial (HW < 128): transposed lanes-on-rows path.
    x, w, sw, sb = make_case(keys[2], 2, 4, 4, 4, 8)
    out = jax.block_until_ready(adain_forward(x, w, sw, sb))
    ref = adain_reference(x, w, sw, sb)
    assert jnp.allclose(out, ref, atol=1e-4, rtol=1e-4), "mismatch (small-HW path)"

    # 4) Forced spatial-split two-pass path (tiny budget), incl. masked partial HW tile.
    x, w, sw, sb = make_case(keys[3], 2, 4, 16, 12, 8)
    out = jax.block_until_ready(adain_forward(x, w, sw, sb, vmem_budget_bytes=16 * 1024))
    ref = adain_reference(x, w, sw, sb)
    assert jnp.allclose(out, ref, atol=1e-4, rtol=1e-4), "mismatch (spatial-split path)"

    print("KERNEL_OK")
</pallas_src>

<mosaic_0001>
module attributes {stable_mosaic.version = 11 : i64} {
  func.func @_adain_rows_kernel(%arg0: i32, %arg1: memref<8x256xf32, #tpu.memory_space<vmem>>, %arg2: memref<8x2xf32, #tpu.memory_space<vmem>>, %arg3: memref<8x256xf32, #tpu.memory_space<vmem>>) attributes {dimension_semantics = [#tpu.dimension_semantics<parallel>], iteration_bounds = array<i64: 1>, scalar_prefetch = 0 : i64, scratch_operands = 0 : i64, tpu.core_type = #tpu.core_type<tc>, window_params = [{transform_indices = @transform_0, window_bounds = array<i64: 8, 256>}, {transform_indices = @transform_1, window_bounds = array<i64: 8, 2>}, {transform_indices = @transform_2, window_bounds = array<i64: 8, 256>}]} {
    %c0 = arith.constant 0 : index
    %c0_0 = arith.constant 0 : index
    %0 = vector.load %arg1[%c0, %c0_0] : memref<8x256xf32, #tpu.memory_space<vmem>>, vector<8x256xf32>
    %cst = arith.constant dense<0.000000e+00> : vector<8xf32>
    %1 = vector.multi_reduction <add>, %0, %cst [1] : vector<8x256xf32> to vector<8xf32>
    %2 = vector.shape_cast %1 : vector<8xf32> to vector<8x1xf32>
    %cst_1 = arith.constant 2.560000e+02 : f32
    %3 = vector.broadcast %cst_1 : f32 to vector<8x1xf32>
    %4 = arith.divf %2, %3 : vector<8x1xf32>
    %5 = vector.broadcast %4 : vector<8x1xf32> to vector<8x256xf32>
    %6 = arith.subf %0, %5 : vector<8x256xf32>
    %7 = arith.mulf %6, %6 : vector<8x256xf32>
    %cst_2 = arith.constant dense<0.000000e+00> : vector<8xf32>
    %8 = vector.multi_reduction <add>, %7, %cst_2 [1] : vector<8x256xf32> to vector<8xf32>
    %9 = vector.shape_cast %8 : vector<8xf32> to vector<8x1xf32>
    %cst_3 = arith.constant 2.560000e+02 : f32
    %10 = vector.broadcast %cst_3 : f32 to vector<8x1xf32>
    %11 = arith.divf %9, %10 : vector<8x1xf32>
    %cst_4 = arith.constant 9.99999974E-6 : f32
    %12 = vector.broadcast %cst_4 : f32 to vector<8x1xf32>
    %13 = arith.addf %11, %12 : vector<8x1xf32>
    %14 = math.rsqrt %13 : vector<8x1xf32>
    %c0_5 = arith.constant 0 : index
    %c0_6 = arith.constant 0 : index
    %15 = vector.load %arg2[%c0_5, %c0_6] : memref<8x2xf32, #tpu.memory_space<vmem>>, vector<8x2xf32>
    %16 = vector.extract_strided_slice %15 {offsets = [0, 0], sizes = [8, 1], strides = [1, 1]} : vector<8x2xf32> to vector<8x1xf32>
    %17 = vector.extract_strided_slice %15 {offsets = [0, 1], sizes = [8, 1], strides = [1, 1]} : vector<8x2xf32> to vector<8x1xf32>
    %18 = arith.mulf %16, %14 : vector<8x1xf32>
    %19 = vector.broadcast %18 : vector<8x1xf32> to vector<8x256xf32>
    %20 = arith.mulf %6, %19 : vector<8x256xf32>
    %21 = vector.broadcast %17 : vector<8x1xf32> to vector<8x256xf32>
    %22 = arith.addf %20, %21 : vector<8x256xf32>
    %c0_7 = arith.constant 0 : index
    %c0_8 = arith.constant 0 : index
    %23 = vector.load %arg3[%c0_7, %c0_8] : memref<8x256xf32, #tpu.memory_space<vmem>>, vector<8x256xf32>
    tpu.vector_store %arg3[%c0_7, %c0_8], %22 {strides = array<i32>} : memref<8x256xf32, #tpu.memory_space<vmem>>, vector<8x256xf32>,
    return
  }
  func.func @transform_0(%arg0: i32) -> (i32, i32) {
    %c0_i32 = arith.constant 0 : i32
    %c0_i32_0 = arith.constant 0 : i32
    return %arg0, %c0_i32 : i32, i32
  }
  func.func @transform_1(%arg0: i32) -> (i32, i32) {
    %c0_i32 = arith.constant 0 : i32
    %c0_i32_0 = arith.constant 0 : i32
    return %arg0, %c0_i32 : i32, i32
  }
  func.func @transform_2(%arg0: i32) -> (i32, i32) {
    %c0_i32 = arith.constant 0 : i32
    %c0_i32_0 = arith.constant 0 : i32
    return %arg0, %c0_i32 : i32, i32
  }
}

</mosaic_0001>

<llo_original>
// kernel: tpu_custom_call.1
$region0: #{tpu_custom_call.1}
  #allocation0 [shape = 'u32[]', space=smem, size = 0x4, offset = 0x4, fixed_abs, tag = 'smem constant byte address 0x4 - core index']
  #allocation1 [shape = 'u32[144,128]{1,0:T(1,128)}', space=vmem, size = 0x12000, scoped, tag = 'internal scratch']
  %s0 = inlined_call_operand.hbm [shape: f32[8,256], index: 0, kind: input, shape index: {}]
  %s1 = inlined_call_operand.vmem [shape: f32[8,2], index: 1, kind: input, shape index: {}]
  %s2 = inlined_call_operand.hbm [shape: f32[8,256], index: 2, kind: output, shape index: {}]
  %s3 = sld [smem:[#allocation0]]
  $region22: #{tpu_custom_call.1} parent=0
    _
  %s5 = ssub.s32 1, %s3
  %s6 = scalar_select 0, %s5, %s3
  $region1: #{tpu_custom_call.1} parent=0
    #allocation2 [shape = 'u8[8192]{0}', space=vmem, size = 0x2000, scoped, tag = 'input window, operand 0, single buffered']
    #allocation3 [shape = 's32[1]{0}', space=sflag, size = 0x4, scoped, tag = 'scoped memory for tpu_custom_call.1']
    #allocation4 [shape = 's32[1]{0}', space=sflag, size = 0x4, scoped, tag = 'scoped memory for tpu_custom_call.1']
    #allocation5 [shape = 'u8[8192]{0}', space=vmem, size = 0x2000, scoped, tag = 'output window, operand 0, single buffered']
    %7 = vsyncpa [#allocation3], 0
    %8 = vsyncpa [#allocation4], 0
    // Predicated region
    $region2: #{tpu_custom_call.1} parent=1 // pred_check
      _
    $region3: #{tpu_custom_call.1} parent=1 // pred_check_branch
      %10 = sbr.rel (0) target = $region5
    $region4: #{tpu_custom_call.1} parent=1 // pred_region
      %s12 = ssub.s32 256, 256
      %13 = vsyncadd [#allocation3], %s12
      %s15 = sshll.u32 [#allocation2], 4
      %s16 = int_to_ptr.vmem [resolvable:$true] %s15
      %18 = dma.hbm_to_vmem [thread:$0]  %s0, 256, %s16, [#allocation3]
    $region5: #{tpu_custom_call.1} parent=1 // pred_fallthru
      _
    // Predicated region
    $region6: #{tpu_custom_call.1} parent=1 // pred_check
      _
    $region7: #{tpu_custom_call.1} parent=1 // pred_check_branch
      %20 = sbr.rel (0) target = $region9
    $region8: #{tpu_custom_call.1} parent=1 // pred_region
      _
    $region9: #{tpu_custom_call.1} parent=1 // pred_fallthru
      _
    // Predicated region
    $region10: #{tpu_custom_call.1} parent=1 // pred_check
      _
    $region11: #{tpu_custom_call.1} parent=1 // pred_check_branch
      %22 = sbr.rel (0) target = $region13
    $region12: #{tpu_custom_call.1} parent=1 // pred_region
      %23 = dma.done [#allocation3], 256
    $region13: #{tpu_custom_call.1} parent=1 // pred_fallthru
      _
    %v24 = vld [vmem:[#allocation2] sm:$0xff]
    %v25 = vld [vmem:[#allocation2 + $0x8] sm:$0xff]
    %v26 = vadd.f32 %v24, %v25
    %27 = vadd.xlane.f32.xlu0 %v26
    %v28 = vpop.xlane.xlu0 %27
    %v29 = vrcp.pop 256.0
    %v30 = vmul.f32 %v28, %v29
    %v31 = vsub.f32 %v24, %v30
    %v32 = vsub.f32 %v25, %v30
    %v33 = vmul.f32 %v31, %v31
    %v34 = vmul.f32 %v32, %v32
    %v35 = vadd.f32 %v33, %v34
    %36 = vadd.xlane.f32.xlu0 %v35
    %v37 = vpop.xlane.xlu0 %36
    %v38 = vmul.f32 %v37, %v29
    %v39 = vadd.f32 %v38, 1e-05
    %v40 = vrsqrt.pop %v39
    %v41 = vld [vmem:[%s1] sm:$0xff]
    %v42 = vmul.f32 %v41, %v40
    %44 = vset.pattern.permute.xlu0 0
    %45 = vperm.xlu0 %44, %v42
    %v46 = vpop.permute.xlu0 %45
    %v48 = vmul.f32 %v31, %v46
    %v49 = vmul.f32 %v32, %v46
    %51 = vset.pattern.permute.xlu0 1
    %52 = vperm.xlu0 %51, %v41
    %v53 = vpop.permute.xlu0 %52
    %v55 = vadd.f32 %v48, %v53
    %v56 = vadd.f32 %v49, %v53
    %57 = vst [vmem:[#allocation5] sm:$0xff] %v55
    %58 = vst [vmem:[#allocation5 + $0x8] sm:$0xff] %v56
    // Predicated region
    $region14: #{tpu_custom_call.1} parent=1 // pred_check
      _
    $region15: #{tpu_custom_call.1} parent=1 // pred_check_branch
      %60 = sbr.rel (0) target = $region17
    $region16: #{tpu_custom_call.1} parent=1 // pred_region
      %s62 = ssub.s32 256, 256
      %63 = vsyncadd [#allocation4], %s62
      %s65 = sshll.u32 [#allocation5], 4
      %s66 = int_to_ptr.vmem [resolvable:$true] %s65
      %68 = dma.vmem_to_hbm [thread:$0]  %s66, 256, %s2, [#allocation4]
    $region17: #{tpu_custom_call.1} parent=1 // pred_fallthru
      _
    // Predicated region
    $region18: #{tpu_custom_call.1} parent=1 // pred_check
      _
    $region19: #{tpu_custom_call.1} parent=1 // pred_check_branch
      %70 = sbr.rel (0) target = $region21
    $region20: #{tpu_custom_call.1} parent=1 // pred_region
      %71 = dma.done [#allocation4], 256
    $region21: #{tpu_custom_call.1} parent=1 // pred_fallthru
      _
    %72 = vsyncpa [#allocation3], 1
    %73 = vsyncpa [#allocation4], 1

</llo_original>
